<compile_context>
chip_gen: v6e
topology: v6e:2x2x1
jax: 0.10.0
libtpu: 0.0.40
codegen_flags: <defaults>
</compile_context>

<pallas_src>
import functools

import numpy as np
import jax
import jax.numpy as jnp
from jax.experimental import pallas as pl
from jax.experimental.pallas import tpu as pltpu


def _vmem_capacity_bytes():
    """Physical VMEM per TensorCore, with a conservative (v7x-sized) fallback."""
    try:
        cap = int(pltpu.get_tpu_info().vmem_capacity_bytes)
        if cap > 0:
            return cap
    except Exception:
        pass
    return 64 * 1024 * 1024


def _choose_tiles(B, L, itemsize):
    """Pick (TB, TL), grid sizes and a VMEM limit.

    The kernel is pure HBM streaming; per-grid-step overhead is ~0.35 us, so the
    tile budget (2 inputs x 2 pipeline buffers) should be a few MiB per buffer:
    ~24 MiB total on v5e/v6e (128 MiB VMEM), ~16 MiB on v7x (64 MiB VMEM/TC).
    """
    vmem_cap = _vmem_capacity_bytes()
    tile_budget = max(8 << 20, min(vmem_cap // 4, 24 << 20))

    b_pad = ((B + 7) // 8) * 8

    # Length tiling: take the whole row when modest; otherwise prefer a
    # 128-multiple that divides L (avoids the last-chunk column mask).
    if L <= 8192:
        TL = L
    else:
        TL = 4096
        for cand in (8192, 4096, 2048, 1024, 512, 256, 128):
            if L % cand == 0:
                TL = cand
                break
    nl = pl.cdiv(L, TL)

    # Rows per batch tile from the budget (2 inputs x 2 pipeline buffers).
    tb = tile_budget // (4 * TL * itemsize)
    tb = max(8, (tb // 8) * 8)           # sublane-aligned
    TB = min(tb, b_pad)

    # v7x megacore: the batch axis is the only "parallel" axis — make sure it
    # has at least two tiles so both TensorCores get work.
    if B > 8 and pl.cdiv(B, TB) < 2:
        TB = max(8, ((b_pad // 2 + 7) // 8) * 8)

    nb = pl.cdiv(B, TB)
    vmem_limit = min(vmem_cap, 4 * TB * TL * itemsize + (8 << 20))
    return TB, TL, nb, nl, int(vmem_limit)


def _error_rate_kernel(pred_ref, tgt_ref, out_ref, *accs, B, L, TB, TL, packed):
    b = pl.program_id(0)          # batch-tile index    ("parallel")
    l = pl.program_id(1)          # length-chunk index  ("arbitrary" reduction)
    nl = pl.num_programs(1)

    @pl.when(l == 0)
    def _():
        for acc in accs:
            acc[...] = jnp.zeros_like(acc)

    pred = pred_ref[...]          # [TB, TL] int
    tgt = tgt_ref[...]            # [TB, TL] int

    valid = tgt != -1
    if L % TL != 0:
        # Only the last chunk has out-of-bounds columns; use a scalar limit so
        # the iota/compare stays (1, TL) instead of a full (TB, TL) iota.
        limit = jnp.where(l == nl - 1, jnp.int32(L - (nl - 1) * TL), jnp.int32(TL))
        col = jax.lax.broadcasted_iota(jnp.int32, (1, TL), 1)
        valid = jnp.logical_and(valid, col < limit)
    err = jnp.logical_and(pred != tgt, valid)

    if packed:
        # One packed int32 per-row counter: low 16 bits = #valid, high = #errors.
        # Safe because L < 2**15 (both counts and their packed sum fit int32).
        combined = valid.astype(jnp.int32) + (err.astype(jnp.int32) << 16)
        accs[0][...] += jnp.sum(combined, axis=1, keepdims=True)
    else:
        accs[0][...] += jnp.sum(err.astype(jnp.int32), axis=1, keepdims=True)
        accs[1][...] += jnp.sum(valid.astype(jnp.int32), axis=1, keepdims=True)

    @pl.when(l == nl - 1)
    def _():
        if packed:
            acc = accs[0][...]
            ec = (acc >> 16).astype(jnp.float32)          # [TB, 1] error counts
            vc = (acc & 0xFFFF).astype(jnp.float32)       # [TB, 1] valid counts
        else:
            ec = accs[0][...].astype(jnp.float32)
            vc = accs[1][...].astype(jnp.float32)
        # Per-row error rate; rows with zero valid targets yield NaN, matching
        # the reference (mean over an empty selection).
        rates = ec / vc                                   # [TB, 1]
        if B % TB != 0:
            # Exclude padded (out-of-bounds) rows of the last batch tile.
            row = jax.lax.broadcasted_iota(jnp.int32, (TB, 1), 0) + b * TB
            rates = jnp.where(row < B, rates, 0.0)
        tile_sum = jnp.sum(rates, axis=0, keepdims=True)  # [1, 1]
        # Lane-dense, fully (8,128)-aligned output block -> unmasked stores.
        out_ref[...] = jnp.broadcast_to(tile_sum, (8, 128))


def error_rate(predictions, targets):
    """predictions, targets: integer [B, L]; returns scalar f32 mean error rate.

    Accepts int8/int16/int32 token ids directly (no wrapper-side cast).
    """
    assert predictions.shape == targets.shape
    B, L = predictions.shape
    itemsize = max(jnp.dtype(predictions.dtype).itemsize,
                   jnp.dtype(targets.dtype).itemsize)
    TB, TL, nb, nl, vmem_limit = _choose_tiles(B, L, itemsize)
    packed = L < (1 << 15)

    kernel = functools.partial(_error_rate_kernel,
                               B=B, L=L, TB=TB, TL=TL, packed=packed)
    scratch = [pltpu.VMEM((TB, 1), jnp.int32)]
    if not packed:
        scratch.append(pltpu.VMEM((TB, 1), jnp.int32))

    rate_sum = pl.pallas_call(
        kernel,
        out_shape=jax.ShapeDtypeStruct((nb * 8, 128), jnp.float32),
        grid_spec=pltpu.PrefetchScalarGridSpec(
            num_scalar_prefetch=0,
            grid=(nb, nl),
            in_specs=[
                pl.BlockSpec((TB, TL), lambda b, l: (b, l)),
                pl.BlockSpec((TB, TL), lambda b, l: (b, l)),
            ],
            out_specs=pl.BlockSpec((8, 128), lambda b, l: (b, 0)),
            scratch_shapes=scratch,
        ),
        compiler_params=pltpu.CompilerParams(
            dimension_semantics=("parallel", "arbitrary"),
            vmem_limit_bytes=vmem_limit),
    )(predictions, targets)

    # Tiny epilogue in JAX: one partial sum per batch tile; unweighted mean over B rows.
    per_tile = rate_sum.reshape(nb, 8, 128)[:, 0, 0]
    return jnp.sum(per_tile) / B


def _reference(predictions, targets):
    """Pure-numpy replica of the PyTorch module."""
    preds = np.asarray(predictions)
    tgts = np.asarray(targets)
    rates = []
    for p, t in zip(preds, tgts):
        mask = t != -1
        rates.append(float(np.mean((p != t)[mask])))
    return float(np.mean(rates))


def _make_inputs(key, B, L):
    k1, k2, k3 = jax.random.split(key, 3)
    predictions = jax.random.randint(k1, (B, L), 0, 10, dtype=jnp.int32)
    targets = jax.random.randint(k2, (B, L), 0, 10, dtype=jnp.int32)
    # mark random positions as padding (-1); keep column 0 valid in every row
    pad_mask = jax.random.bernoulli(k3, p=0.25, shape=(B, L))
    pad_mask = pad_mask.at[:, 0].set(False)
    targets = jnp.where(pad_mask, jnp.int32(-1), targets)
    return predictions, targets


if __name__ == "__main__":
    key = jax.random.PRNGKey(0)
    k_a, k_b = jax.random.split(key)

    # Case 1: small, lane-aligned shapes (single batch tile, single length chunk).
    preds_a, tgts_a = _make_inputs(k_a, 8, 128)
    res_a = jax.block_until_ready(error_rate(preds_a, tgts_a))
    ref_a = _reference(preds_a, tgts_a)
    if not np.allclose(np.asarray(res_a), ref_a, rtol=1e-5, atol=1e-6):
        raise AssertionError(f"mismatch (case 1): kernel={float(res_a)} ref={ref_a}")

    # Case 2: ragged shapes (B % 8 != 0, L % 128 != 0) -> exercises remainder-row
    # masking and the >=2 batch tiles (megacore) path.
    preds_b, tgts_b = _make_inputs(k_b, 10, 200)
    res_b = jax.block_until_ready(error_rate(preds_b, tgts_b))
    ref_b = _reference(preds_b, tgts_b)
    if not np.allclose(np.asarray(res_b), ref_b, rtol=1e-5, atol=1e-6):
        raise AssertionError(f"mismatch (case 2): kernel={float(res_b)} ref={ref_b}")

    print("KERNEL_OK")
</pallas_src>

<mosaic_0001>
module attributes {stable_mosaic.version = 11 : i64} {
  func.func @_error_rate_kernel(%arg0: i32, %arg1: i32, %arg2: memref<8x128xi32, #tpu.memory_space<vmem>>, %arg3: memref<8x128xi32, #tpu.memory_space<vmem>>, %arg4: memref<8x128xf32, #tpu.memory_space<vmem>>, %arg5: memref<8x1xi32, #tpu.memory_space<vmem>>) attributes {dimension_semantics = [#tpu.dimension_semantics<parallel>, #tpu.dimension_semantics<arbitrary>], iteration_bounds = array<i64: 1, 1>, scalar_prefetch = 0 : i64, scratch_operands = 1 : i64, tpu.core_type = #tpu.core_type<tc>, window_params = [{transform_indices = @transform_0, window_bounds = array<i64: 8, 128>}, {transform_indices = @transform_1, window_bounds = array<i64: 8, 128>}, {transform_indices = @transform_2, window_bounds = array<i64: 8, 128>}]} {
    %c0_i32 = arith.constant 0 : i32
    %0 = arith.cmpi eq, %arg1, %c0_i32 : i32
    %1 = arith.extui %0 : i1 to i32
    %c0_i32_0 = arith.constant 0 : i32
    %2 = arith.cmpi ne, %1, %c0_i32_0 : i32
    scf.if %2 {
      %c0_i32_10 = arith.constant 0 : i32
      %22 = vector.broadcast %c0_i32_10 : i32 to vector<8x1xi32>
      %c0_11 = arith.constant 0 : index
      %c0_12 = arith.constant 0 : index
      %23 = vector.load %arg5[%c0_11, %c0_12] : memref<8x1xi32, #tpu.memory_space<vmem>>, vector<8x1xi32>
      tpu.vector_store %arg5[%c0_11, %c0_12], %22 {strides = array<i32>} : memref<8x1xi32, #tpu.memory_space<vmem>>, vector<8x1xi32>,
    } else {
    }
    %c0 = arith.constant 0 : index
    %c0_1 = arith.constant 0 : index
    %3 = vector.load %arg2[%c0, %c0_1] : memref<8x128xi32, #tpu.memory_space<vmem>>, vector<8x128xi32>
    %c0_2 = arith.constant 0 : index
    %c0_3 = arith.constant 0 : index
    %4 = vector.load %arg3[%c0_2, %c0_3] : memref<8x128xi32, #tpu.memory_space<vmem>>, vector<8x128xi32>
    %c-1_i32 = arith.constant -1 : i32
    %5 = vector.broadcast %c-1_i32 : i32 to vector<8x128xi32>
    %6 = arith.cmpi ne, %4, %5 : vector<8x128xi32>
    %7 = arith.cmpi ne, %3, %4 : vector<8x128xi32>
    %8 = arith.andi %7, %6 : vector<8x128xi1>
    %9 = arith.extui %6 : vector<8x128xi1> to vector<8x128xi32>
    %10 = arith.extui %8 : vector<8x128xi1> to vector<8x128xi32>
    %c16_i32 = arith.constant 16 : i32
    %11 = vector.broadcast %c16_i32 : i32 to vector<8x128xi32>
    %12 = arith.shli %10, %11 : vector<8x128xi32>
    %13 = arith.addi %9, %12 : vector<8x128xi32>
    %c0_4 = arith.constant 0 : index
    %c0_5 = arith.constant 0 : index
    %14 = vector.load %arg5[%c0_4, %c0_5] : memref<8x1xi32, #tpu.memory_space<vmem>>, vector<8x1xi32>
    %cst = arith.constant dense<0> : vector<8xi32>
    %15 = vector.multi_reduction <add>, %13, %cst [1] : vector<8x128xi32> to vector<8xi32>
    %16 = vector.shape_cast %15 : vector<8xi32> to vector<8x1xi32>
    %17 = arith.addi %14, %16 : vector<8x1xi32>
    %c0_6 = arith.constant 0 : index
    %c0_7 = arith.constant 0 : index
    %18 = vector.load %arg5[%c0_6, %c0_7] : memref<8x1xi32, #tpu.memory_space<vmem>>, vector<8x1xi32>
    tpu.vector_store %arg5[%c0_6, %c0_7], %17 {strides = array<i32>} : memref<8x1xi32, #tpu.memory_space<vmem>>, vector<8x1xi32>,
    %c0_i32_8 = arith.constant 0 : i32
    %19 = arith.cmpi eq, %arg1, %c0_i32_8 : i32
    %20 = arith.extui %19 : i1 to i32
    %c0_i32_9 = arith.constant 0 : i32
    %21 = arith.cmpi ne, %20, %c0_i32_9 : i32
    scf.if %21 {
      %c0_10 = arith.constant 0 : index
      %c0_11 = arith.constant 0 : index
      %22 = vector.load %arg5[%c0_10, %c0_11] : memref<8x1xi32, #tpu.memory_space<vmem>>, vector<8x1xi32>
      %c16_i32_12 = arith.constant 16 : i32
      %23 = vector.broadcast %c16_i32_12 : i32 to vector<8x1xi32>
      %24 = arith.shrsi %22, %23 : vector<8x1xi32>
      %25 = arith.sitofp %24 : vector<8x1xi32> to vector<8x1xf32>
      %c65535_i32 = arith.constant 65535 : i32
      %26 = vector.broadcast %c65535_i32 : i32 to vector<8x1xi32>
      %27 = arith.andi %22, %26 : vector<8x1xi32>
      %28 = arith.sitofp %27 : vector<8x1xi32> to vector<8x1xf32>
      %29 = arith.divf %25, %28 : vector<8x1xf32>
      %cst_13 = arith.constant dense<0.000000e+00> : vector<1xf32>
      %30 = vector.multi_reduction <add>, %29, %cst_13 [0] : vector<8x1xf32> to vector<1xf32>
      %31 = vector.shape_cast %30 : vector<1xf32> to vector<1x1xf32>
      %32 = vector.shape_cast %31 : vector<1x1xf32> to vector<1x1xf32>
      %33 = vector.broadcast %32 : vector<1x1xf32> to vector<8x128xf32>
      %c0_14 = arith.constant 0 : index
      %c0_15 = arith.constant 0 : index
      %34 = vector.load %arg4[%c0_14, %c0_15] : memref<8x128xf32, #tpu.memory_space<vmem>>, vector<8x128xf32>
      tpu.vector_store %arg4[%c0_14, %c0_15], %33 {strides = array<i32>} : memref<8x128xf32, #tpu.memory_space<vmem>>, vector<8x128xf32>,
    } else {
    }
    return
  }
  func.func @transform_0(%arg0: i32, %arg1: i32) -> (i32, i32) {
    %c0_i32 = arith.constant 0 : i32
    return %arg0, %arg1 : i32, i32
  }
  func.func @transform_1(%arg0: i32, %arg1: i32) -> (i32, i32) {
    %c0_i32 = arith.constant 0 : i32
    return %arg0, %arg1 : i32, i32
  }
  func.func @transform_2(%arg0: i32, %arg1: i32) -> (i32, i32) {
    %c0_i32 = arith.constant 0 : i32
    %c0_i32_0 = arith.constant 0 : i32
    return %arg0, %c0_i32 : i32, i32
  }
}

</mosaic_0001>

<llo_original>
// kernel: tpu_custom_call.1
$region0: #{tpu_custom_call.1}
  #allocation0 [shape = 'u32[]', space=smem, size = 0x4, offset = 0x4, fixed_abs, tag = 'smem constant byte address 0x4 - core index']
  #allocation1 [shape = 'u32[144,128]{1,0:T(1,128)}', space=vmem, size = 0x12000, scoped, tag = 'internal scratch']
  #allocation2 [shape = 's32[8,1]{1,0:T(8,128)}', space=vmem, size = 0x1000, scoped, tag = 'scratch operand']
  %s0 = inlined_call_operand.hbm [shape: s32[8,128], index: 0, kind: input, shape index: {}]
  %s1 = inlined_call_operand.hbm [shape: s32[8,128], index: 1, kind: input, shape index: {}]
  %s2 = inlined_call_operand.hbm [shape: f32[8,128], index: 2, kind: output, shape index: {}]
  %s3 = sld [smem:[#allocation0]]
  $region34: #{tpu_custom_call.1} parent=0
    _
  %s5 = ssub.s32 1, %s3
  %s6 = scalar_select 0, %s5, %s3
  $region1: #{tpu_custom_call.1} parent=0
    #allocation3 [shape = 'u8[4096]{0}', space=vmem, size = 0x1000, scoped, tag = 'input window, operand 0, single buffered']
    #allocation4 [shape = 's32[1]{0}', space=sflag, size = 0x4, scoped, tag = 'scoped memory for tpu_custom_call.1']
    #allocation5 [shape = 's32[1]{0}', space=sflag, size = 0x4, scoped, tag = 'scoped memory for tpu_custom_call.1']
    #allocation6 [shape = 'u8[4096]{0}', space=vmem, size = 0x1000, scoped, tag = 'input window, operand 1, single buffered']
    #allocation7 [shape = 's32[1]{0}', space=sflag, size = 0x4, scoped, tag = 'scoped memory for tpu_custom_call.1']
    #allocation8 [shape = 'u8[4096]{0}', space=vmem, size = 0x1000, scoped, tag = 'output window, operand 0, single buffered']
    %7 = vsyncpa [#allocation4], 0
    %8 = vsyncpa [#allocation7], 0
    %9 = vsyncpa [#allocation5], 0
    // Predicated region
    $region2: #{tpu_custom_call.1} parent=1 // pred_check
      _
    $region3: #{tpu_custom_call.1} parent=1 // pred_check_branch
      %11 = sbr.rel (0) target = $region5
    $region4: #{tpu_custom_call.1} parent=1 // pred_region
      %s13 = ssub.s32 128, 128
      %14 = vsyncadd [#allocation4], %s13
      %s16 = sshll.u32 [#allocation3], 4
      %s17 = int_to_ptr.vmem [resolvable:$true] %s16
      %19 = dma.hbm_to_vmem [thread:$0]  %s0, 128, %s17, [#allocation4]
    $region5: #{tpu_custom_call.1} parent=1 // pred_fallthru
      _
    // Predicated region
    $region6: #{tpu_custom_call.1} parent=1 // pred_check
      _
    $region7: #{tpu_custom_call.1} parent=1 // pred_check_branch
      %21 = sbr.rel (0) target = $region9
    $region8: #{tpu_custom_call.1} parent=1 // pred_region
      %s23 = ssub.s32 128, 128
      %24 = vsyncadd [#allocation7], %s23
      %s26 = sshll.u32 [#allocation6], 4
      %s27 = int_to_ptr.vmem [resolvable:$true] %s26
      %29 = dma.hbm_to_vmem [thread:$0]  %s1, 128, %s27, [#allocation7]
    $region9: #{tpu_custom_call.1} parent=1 // pred_fallthru
      _
    // Predicated region
    $region10: #{tpu_custom_call.1} parent=1 // pred_check
      _
    $region11: #{tpu_custom_call.1} parent=1 // pred_check_branch
      %31 = sbr.rel (0) target = $region13
    $region12: #{tpu_custom_call.1} parent=1 // pred_region
      %32 = dma.done [#allocation4], 128
    $region13: #{tpu_custom_call.1} parent=1 // pred_fallthru
      _
    // Predicated region
    $region14: #{tpu_custom_call.1} parent=1 // pred_check
      _
    $region15: #{tpu_custom_call.1} parent=1 // pred_check_branch
      %34 = sbr.rel (0) target = $region17
    $region16: #{tpu_custom_call.1} parent=1 // pred_region
      %35 = dma.done [#allocation7], 128
    $region17: #{tpu_custom_call.1} parent=1 // pred_fallthru
      _
    %p36 = scmp.eq.s32.totalorder 0, 0
    // Predicated region
    $region18: #{tpu_custom_call.1} parent=1 // pred_check
      %p37 = pneg %p36
    $region19: #{tpu_custom_call.1} parent=1 // pred_check_branch
      %39 = sbr.rel (%p37) target = $region21
    $region20: #{tpu_custom_call.1} parent=1 // pred_region
      %vm40 = vcmask 7168
      %41 = vst.msk [vmem:[#allocation2] sm:$0xff] %vm40, 0
    $region21: #{tpu_custom_call.1} parent=1 // pred_fallthru
      _
    %v42 = vld [vmem:[#allocation3] sm:$0xff]
    %v43 = vld [vmem:[#allocation6] sm:$0xff]
    %vm44 = vcmp.ne.s32.totalorder %v43, 4294967295
    %vm45 = vcmp.ne.s32.totalorder %v42, %v43
    %vm46 = vmand %vm45, %vm44
    %v47 = vsel %vm44, 1, 0
    %v48 = vsel %vm46, 1, 0
    %v49 = vshll.u32 %v48, 16
    %v50 = vadd.s32 %v47, %v49
    %v51 = vld [vmem:[#allocation2] sm:$0xff]
    %v52 = vand.u32 %v50, 65535
    %v53 = vshrl.u32 %v50, 16
    %v54 = vcvt.s32.f32 %v52
    %v55 = vcvt.s32.f32 %v53
    %56 = vadd.xlane.f32.xlu0 %v54
    %v57 = vpop.xlane.xlu0 %56
    %58 = vadd.xlane.f32.xlu0 %v55
    %v59 = vpop.xlane.xlu0 %58
    %v60 = vcvt.f32.s32 %v57
    %v61 = vcvt.f32.s32 %v59
    %v62 = vshll.u32 %v61, 16
    %v63 = vadd.s32 %v62, %v60
    %v64 = vadd.s32 %v51, %v63
    %vm65 = vcmask 7168
    %66 = vst.msk [vmem:[#allocation2] sm:$0xff] %vm65, %v64
    // Predicated region
    $region22: #{tpu_custom_call.1} parent=1 // pred_check
      %p67 = pneg %p36
    $region23: #{tpu_custom_call.1} parent=1 // pred_check_branch
      %69 = sbr.rel (%p67) target = $region25
    $region24: #{tpu_custom_call.1} parent=1 // pred_region
      %v70 = vld [vmem:[#allocation2] sm:$0xff]
      %v71 = vshra.s32 %v70, 16
      %v72 = vcvt.s32.f32 %v71
      %v73 = vand.u32 %v70, 65535
      %v74 = vcvt.s32.f32 %v73
      %v75 = vrcp.pop %v74
      %v76 = vmul.f32 %v72, %v75
      %v77 = vsel %vm65, %v76, 0.0
      %v78 = vrot.slane %v77, 4
      %v79 = vadd.f32 %v77, %v78
      %v80 = vrot.slane %v79, 2
      %v81 = vadd.f32 %v79, %v80
      %v82 = vrot.slane %v81, 1
      %v83 = vadd.f32 %v81, %v82
      %85 = vset.pattern.permute.xlu0 0
      %86 = vperm.xlu0 %85, %v83
      %v87 = vpop.permute.xlu0 %86
      %89 = vst [vmem:[#allocation8] sm:$0xff] %v87
    $region25: #{tpu_custom_call.1} parent=1 // pred_fallthru
      _
    // Predicated region
    $region26: #{tpu_custom_call.1} parent=1 // pred_check
      _
    $region27: #{tpu_custom_call.1} parent=1 // pred_check_branch
      %91 = sbr.rel (0) target = $region29
    $region28: #{tpu_custom_call.1} parent=1 // pred_region
      %s93 = ssub.s32 128, 128
      %94 = vsyncadd [#allocation5], %s93
      %s96 = sshll.u32 [#allocation8], 4
      %s97 = int_to_ptr.vmem [resolvable:$true] %s96
      %99 = dma.vmem_to_hbm [thread:$0]  %s97, 128, %s2, [#allocation5]
    $region29: #{tpu_custom_call.1} parent=1 // pred_fallthru
      _
    // Predicated region
    $region30: #{tpu_custom_call.1} parent=1 // pred_check
      _
    $region31: #{tpu_custom_call.1} parent=1 // pred_check_branch
      %101 = sbr.rel (0) target = $region33
    $region32: #{tpu_custom_call.1} parent=1 // pred_region
      %102 = dma.done [#allocation5], 128
    $region33: #{tpu_custom_call.1} parent=1 // pred_fallthru
      _
    %103 = vsyncpa [#allocation4], 1
    %104 = vsyncpa [#allocation7], 1
    %105 = vsyncpa [#allocation5], 1

</llo_original>
